<compile_context>
chip_gen: v6e
topology: v6e:2x2x1
jax: 0.10.0
libtpu: 0.0.40
codegen_flags: <defaults>
</compile_context>

<pallas_src>
import jax
import jax.numpy as jnp
from jax.experimental import pallas as pl
from jax.experimental.pallas import tpu as pltpu
import numpy as np


def _round_up(x, m):
    return (x + m - 1) // m * m


def _linear_with_repeat_kernel(x1_ref, c_ref, w1_ref, o_ref):
    # x1_ref: (TB, TP, n1)  point-feature tile (compute dtype)
    # c_ref : (TB, 1, O)    hoisted per-ray term x2 @ W2^T + bias (f32)
    # w1_ref: (n1, O)       W1^T, fully resident (compute dtype)
    # o_ref : (TB, TP, O)
    tb, tp, n1 = x1_ref.shape
    o = w1_ref.shape[1]
    x1 = x1_ref[...].reshape(tb * tp, n1)          # layout-free: tp % 8 == 0 or tb == 1
    acc = jnp.dot(x1, w1_ref[...], preferred_element_type=jnp.float32)
    out = acc.reshape(tb, tp, o) + c_ref[...]      # f32 broadcast add over points
    o_ref[...] = out.astype(o_ref.dtype)


def linear_with_repeat(x1, x2, weight, bias=None, *,
                       compute_dtype=None, out_dtype=None,
                       target_out_block_bytes=2 * 1024 * 1024):
    """
    x1: (B, P, n1), x2: (B, n2), weight: (O, n1 + n2), bias: (O,) or None.
    Returns (B, P, O) in `out_dtype` (defaults to x1.dtype).
    """
    B, P, n1 = x1.shape
    n2 = x2.shape[-1]
    O = weight.shape[0]
    assert weight.shape[1] == n1 + n2

    compute_dtype = compute_dtype or x1.dtype
    out_dtype = out_dtype or x1.dtype
    in_itemsize = jnp.dtype(compute_dtype).itemsize
    out_itemsize = jnp.dtype(out_dtype).itemsize

    # ---- Hoist the per-ray term: one tiny XLA matmul, folded with bias (f32). ----
    w1_t = jnp.transpose(weight[:, :n1]).astype(compute_dtype)          # (n1, O)
    out2b = jnp.dot(x2.astype(jnp.float32),
                    jnp.transpose(weight[:, n1:]).astype(jnp.float32))  # (B, O)
    if bias is not None:
        out2b = out2b + bias.astype(jnp.float32)
    out2b = out2b[:, None, :].astype(jnp.float32)                       # (B, 1, O)
    x1c = x1.astype(compute_dtype)

    # ---- Tile selection: big output blocks, VMEM-budget aware. ----
    sub = 16 if in_itemsize == 2 else 8            # sublane granularity
    lanes_n1 = _round_up(n1, 128)                  # x1 is lane-padded in VMEM
    lanes_o = _round_up(O, 128)

    try:
        vmem_cap = int(getattr(pltpu.get_tpu_info(), "vmem_capacity_bytes",
                               64 * 1024 * 1024))
    except Exception:
        vmem_cap = 64 * 1024 * 1024                # conservative (v7x per-TC)
    vmem_limit = int(min(vmem_cap * 3 // 4, 96 * 1024 * 1024))
    tile_budget = vmem_limit // 2                  # headroom for compiler scratch

    def resident_bytes(tb, tp):
        rows = tb * _round_up(tp, sub)
        x1_b = rows * lanes_n1 * in_itemsize
        out_b = rows * lanes_o * out_itemsize
        c_b = tb * sub * lanes_o * 4
        w_b = _round_up(n1, sub) * lanes_o * in_itemsize
        return 2 * (x1_b + out_b + c_b + w_b)      # double buffering

    target_rows = max(sub, _round_up(
        target_out_block_bytes // max(1, O * out_itemsize), sub))

    if P <= target_rows:
        TP = P                                     # full-dim block: always legal, no pad
        TB = max(1, min(B, target_rows // max(P, 1))) if P % sub == 0 else 1
    else:
        TP = target_rows                           # multiple of `sub`, < P
        TB = 1

    # Shrink until resident tiles fit the VMEM budget (matters on v7x, 64 MiB).
    while TB > 1 and resident_bytes(TB, TP) > tile_budget:
        TB = max(1, TB // 2)
    while TP > sub and resident_bytes(TB, TP) > tile_budget:
        TP = max(sub, _round_up(TP // 2, sub))

    # Keep >= 2 grid steps on a parallel axis so both v7x TensorCores get work.
    if pl.cdiv(B, TB) * pl.cdiv(P, TP) == 1:
        if B >= 2:
            TB = pl.cdiv(B, 2)
        elif P >= 2 * sub:
            TP = _round_up(pl.cdiv(P, 2), sub)

    grid = (pl.cdiv(B, TB), pl.cdiv(P, TP))

    cost = pl.CostEstimate(
        flops=2 * B * P * n1 * O,
        transcendentals=0,
        bytes_accessed=(B * P * n1 * in_itemsize       # x1 in
                        + n1 * O * in_itemsize         # W1^T in
                        + B * O * 4                    # per-ray term in
                        + B * P * O * out_itemsize),   # out
    )

    out = pl.pallas_call(
        _linear_with_repeat_kernel,
        out_shape=jax.ShapeDtypeStruct((B, P, O), out_dtype),
        grid_spec=pltpu.PrefetchScalarGridSpec(
            num_scalar_prefetch=0,
            grid=grid,
            in_specs=[
                pl.BlockSpec((TB, TP, n1), lambda b, p: (b, p, 0)),   # x1 tile
                pl.BlockSpec((TB, 1, O), lambda b, p: (b, 0, 0)),     # per-ray term
                pl.BlockSpec((n1, O), lambda b, p: (0, 0)),           # W1^T resident
            ],
            out_specs=pl.BlockSpec((TB, TP, O), lambda b, p: (b, p, 0)),
        ),
        compiler_params=pltpu.CompilerParams(
            dimension_semantics=("parallel", "parallel"),
            vmem_limit_bytes=vmem_limit),
        cost_estimate=cost,
    )(x1c, out2b, w1_t)
    return out


def _reference(x1, x2, weight, bias):
    n1 = x1.shape[-1]
    out1 = jnp.einsum("bpi,oi->bpo", x1, weight[:, :n1])
    if bias is not None:
        out1 = out1 + bias
    out2 = jnp.einsum("bi,oi->bo", x2, weight[:, n1:])
    return out1 + out2[:, None, :]


if __name__ == "__main__":
    # Small shapes implied by the NeRF usage: per-point features + per-ray dirs.
    B, P = 2, 8          # batch (rays), points per ray
    n1, n2 = 32, 16      # point-feature dim, direction-embedding dim
    O = 64               # out_features
    in_features = n1 + n2

    key = jax.random.PRNGKey(0)
    k_w, k_b, k_x1, k_x2 = jax.random.split(key, 4)

    # Deterministic init mirroring nn.Linear.reset_parameters.
    bound = 1.0 / np.sqrt(in_features)
    weight = jax.random.uniform(k_w, (O, in_features), jnp.float32,
                                minval=-bound, maxval=bound)
    bias = jax.random.uniform(k_b, (O,), jnp.float32,
                              minval=-bound, maxval=bound)
    x1 = jax.random.normal(k_x1, (B, P, n1), jnp.float32)
    x2 = jax.random.normal(k_x2, (B, n2), jnp.float32)

    ref = _reference(x1, x2, weight, bias)

    # f32 path: tight agreement with the reference.
    out = jax.block_until_ready(linear_with_repeat(x1, x2, weight, bias))
    np.testing.assert_allclose(np.asarray(out), np.asarray(ref),
                               rtol=1e-5, atol=1e-5)

    # bf16 streaming path (halves x1/output HBM traffic); accumulation stays f32.
    out_bf16 = jax.block_until_ready(
        linear_with_repeat(x1, x2, weight, bias,
                           compute_dtype=jnp.bfloat16, out_dtype=jnp.bfloat16))
    np.testing.assert_allclose(np.asarray(out_bf16, dtype=np.float32),
                               np.asarray(ref), rtol=5e-2, atol=5e-2)

    print("KERNEL_OK")
</pallas_src>

<mosaic_0001>
module attributes {stable_mosaic.version = 11 : i64} {
  func.func @_linear_with_repeat_kernel(%arg0: i32, %arg1: i32, %arg2: memref<1x8x32xf32, #tpu.memory_space<vmem>>, %arg3: memref<1x1x64xf32, #tpu.memory_space<vmem>>, %arg4: memref<32x64xf32, #tpu.memory_space<vmem>>, %arg5: memref<1x8x64xf32, #tpu.memory_space<vmem>>) attributes {dimension_semantics = [#tpu.dimension_semantics<parallel>, #tpu.dimension_semantics<parallel>], iteration_bounds = array<i64: 2, 1>, scalar_prefetch = 0 : i64, scratch_operands = 0 : i64, tpu.core_type = #tpu.core_type<tc>, window_params = [{transform_indices = @transform_0, window_bounds = array<i64: 1, 8, 32>}, {transform_indices = @transform_1, window_bounds = array<i64: 1, 1, 64>}, {pipeline_mode = #tpu.pipeline_mode<synchronous>, transform_indices = @transform_2, window_bounds = array<i64: 32, 64>}, {transform_indices = @transform_3, window_bounds = array<i64: 1, 8, 64>}]} {
    %c0 = arith.constant 0 : index
    %c0_0 = arith.constant 0 : index
    %c0_1 = arith.constant 0 : index
    %0 = vector.load %arg2[%c0, %c0_0, %c0_1] : memref<1x8x32xf32, #tpu.memory_space<vmem>>, vector<1x8x32xf32>
    %1 = vector.shape_cast %0 : vector<1x8x32xf32> to vector<8x32xf32>
    %c0_2 = arith.constant 0 : index
    %c0_3 = arith.constant 0 : index
    %2 = vector.load %arg4[%c0_2, %c0_3] : memref<32x64xf32, #tpu.memory_space<vmem>>, vector<32x64xf32>
    %cst = arith.constant dense<0.000000e+00> : vector<8x64xf32>
    %3 = tpu.matmul %1, %2, %cst {dimension_numbers = #tpu.dot_dimension_numbers<[1], [0], [0], [1], [0, 0, 1, 1], [], []>} : vector<8x32xf32>, vector<32x64xf32>, vector<8x64xf32> -> vector<8x64xf32>
    %4 = vector.shape_cast %3 : vector<8x64xf32> to vector<1x8x64xf32>
    %c0_4 = arith.constant 0 : index
    %c0_5 = arith.constant 0 : index
    %c0_6 = arith.constant 0 : index
    %5 = vector.load %arg3[%c0_4, %c0_5, %c0_6] : memref<1x1x64xf32, #tpu.memory_space<vmem>>, vector<1x1x64xf32>
    %6 = vector.broadcast %5 : vector<1x1x64xf32> to vector<1x8x64xf32>
    %7 = arith.addf %4, %6 : vector<1x8x64xf32>
    %c0_7 = arith.constant 0 : index
    %c0_8 = arith.constant 0 : index
    %c0_9 = arith.constant 0 : index
    %8 = vector.load %arg5[%c0_7, %c0_8, %c0_9] : memref<1x8x64xf32, #tpu.memory_space<vmem>>, vector<1x8x64xf32>
    tpu.vector_store %arg5[%c0_7, %c0_8, %c0_9], %7 {strides = array<i32>} : memref<1x8x64xf32, #tpu.memory_space<vmem>>, vector<1x8x64xf32>,
    return
  }
  func.func @transform_0(%arg0: i32, %arg1: i32) -> (i32, i32, i32) {
    %c0_i32 = arith.constant 0 : i32
    %c0_i32_0 = arith.constant 0 : i32
    return %arg0, %arg1, %c0_i32 : i32, i32, i32
  }
  func.func @transform_1(%arg0: i32, %arg1: i32) -> (i32, i32, i32) {
    %c0_i32 = arith.constant 0 : i32
    %c0_i32_0 = arith.constant 0 : i32
    %c0_i32_1 = arith.constant 0 : i32
    return %arg0, %c0_i32, %c0_i32_0 : i32, i32, i32
  }
  func.func @transform_2(%arg0: i32, %arg1: i32) -> (i32, i32) {
    %c0_i32 = arith.constant 0 : i32
    %c0_i32_0 = arith.constant 0 : i32
    %c0_i32_1 = arith.constant 0 : i32
    return %c0_i32, %c0_i32_0 : i32, i32
  }
  func.func @transform_3(%arg0: i32, %arg1: i32) -> (i32, i32, i32) {
    %c0_i32 = arith.constant 0 : i32
    %c0_i32_0 = arith.constant 0 : i32
    return %arg0, %arg1, %c0_i32 : i32, i32, i32
  }
}

</mosaic_0001>

<llo_original>
// kernel: tpu_custom_call.1
$region0: #{tpu_custom_call.1}
  #allocation0 [shape = 'u32[]', space=smem, size = 0x4, offset = 0x4, fixed_abs, tag = 'smem constant byte address 0x4 - core index']
  #allocation1 [shape = 'u32[144,128]{1,0:T(1,128)}', space=vmem, size = 0x12000, scoped, tag = 'internal scratch']
  %s0 = inlined_call_operand.hbm [shape: f32[2,8,32], index: 0, kind: input, shape index: {}]
  %s1 = inlined_call_operand.hbm [shape: f32[2,1,64], index: 1, kind: input, shape index: {}]
  %s2 = inlined_call_operand.hbm [shape: f32[32,64], index: 2, kind: input, shape index: {}]
  %s3 = inlined_call_operand.hbm [shape: f32[2,8,64], index: 3, kind: output, shape index: {}]
  %s4 = sld [smem:[#allocation0]]
  $region57: #{tpu_custom_call.1} parent=0
    _
  %s6 = ssub.s32 1, %s4
  %s7 = scalar_select 0, %s6, %s4
  $region1: #{tpu_custom_call.1} parent=0
    #allocation2 [shape = 'u8[8192]{0}', space=vmem, size = 0x2000, scoped, tag = 'input window, operand 0']
    #allocation3 [shape = 's32[2]{0}', space=sflag, size = 0x8, scoped, tag = 'scoped memory for tpu_custom_call.1']
    #allocation4 [shape = 's32[2]{0}', space=sflag, size = 0x8, scoped, tag = 'scoped memory for tpu_custom_call.1']
    #allocation5 [shape = 'u8[1024]{0}', space=vmem, size = 0x400, scoped, tag = 'input window, operand 1']
    #allocation6 [shape = 's32[2]{0}', space=sflag, size = 0x8, scoped, tag = 'scoped memory for tpu_custom_call.1']
    #allocation7 [shape = 'u8[16384]{0}', space=vmem, size = 0x4000, scoped, tag = 'input window, operand 2, single buffered']
    #allocation8 [shape = 'u8[8192]{0}', space=vmem, size = 0x2000, scoped, tag = 'output window, operand 0']
    %8 = vsyncpa [#allocation3], 0
    %s9 = scalar_lea.sflag [#allocation3], 1
    %10 = vsyncpa %s9, 0
    %11 = vsyncpa [#allocation6], 0
    %s12 = scalar_lea.sflag [#allocation6], 1
    %13 = vsyncpa %s12, 0
    %14 = vsyncpa [#allocation4], 0
    %s15 = scalar_lea.sflag [#allocation4], 1
    %16 = vsyncpa %s15, 0
    loop: start=0, step=1, limit=4
    $region2: #{tpu_custom_call.1} parent=1 // loop_pre_header
      _
    $region3: #{tpu_custom_call.1} parent=1 // loop_header
      %s18 = sphi 0, %s22
      %p19 = scmp.ge.s32.totalorder %s18, 4
      %s25 = sphi 0, %s37
      %s26 = sphi 0, %s33
      %s27 = sphi 0, %s25
      %s28 = sphi 0, %s26
      %s29 = sphi 0, %s27
      %s30 = sphi 0, %s28
      %s42 = sphi 0, %s44
      %s45 = sphi 0, %s42
      %s46 = sphi 0, %s45
      %s62 = sphi 0, %s46
      %s68 = sphi 0, %s70
      %s71 = sphi 0, %s68
      %s72 = sphi 0, %s71
      %s88 = sphi 0, %s72
      %s92 = sphi 0, %s92
      %s94 = sphi 0, %s92
      %s95 = sphi 0, %s94
      %s109 = sphi 0, %s95
      %s117 = sphi 0, %s119
      %s120 = sphi 0, %s117
      %s121 = sphi 0, %s120
      %s137 = sphi 0, %s121
    $region4: #{tpu_custom_call.1} parent=1 // loop_header_branch
      %21 = sbr.rel (%p19) target = $region8
    $region5: #{tpu_custom_call.1} parent=1 // loop_body
      %s23 = ssub.s32 %s18, 1
      %s24 = ssub.s32 %s18, 2
      %s31 = sadd.s32 1, %s26
      %p32 = scmp.ge.s32.totalorder %s31, 1
      %s33 = scalar_select %p32, 0, %s31
      %s34 = sadd.s32 1, %s25
      %s35 = scalar_select %p32, %s34, %s25
      %p36 = scmp.ge.s32.totalorder %s35, 2
      %s37 = scalar_select %p36, 0, %s35
      %s38 = ssub.s32 %s25, %s37
      %s39 = ssub.s32 %s26, %s33
      %s40 = sor.u32 %s38, %s39
      %p41 = scmp.eq.s32.totalorder %s40, 0
      %s43 = sadd.s32 %s42, 1
      %s44 = scalar_select %p41, %s42, %s43
      %p47 = pneg %p41
      %p48 = scmp.eq.s32.totalorder %s18, 1
      %p49 = por %p47, %p48
      %p50 = scmp.ne.s32.totalorder %s42, %s45
      %p51 = scmp.eq.s32.totalorder %s18, 0
      %p52 = por %p50, %p51
      %p53 = scmp.ne.s32.totalorder %s42, %s45
      %p54 = scmp.eq.s32.totalorder %s23, 1
      %p55 = por %p53, %p54
      %p56 = scmp.ne.s32.totalorder %s45, %s46
      %p57 = scmp.eq.s32.totalorder %s23, 0
      %p58 = por %p56, %p57
      %p59 = scmp.ne.s32.totalorder %s45, %s46
      %p60 = scmp.eq.s32.totalorder %s24, 1
      %p61 = por %p59, %p60
      %p63 = scmp.ne.s32.totalorder %s46, %s62
      %p64 = scmp.eq.s32.totalorder %s24, 0
      %p65 = por %p63, %p64
      %s66 = ssub.s32 %s25, %s37
      %p67 = scmp.eq.s32.totalorder %s66, 0
      %s69 = sadd.s32 %s68, 1
      %s70 = scalar_select %p67, %s68, %s69
      %p73 = pneg %p67
      %p74 = scmp.eq.s32.totalorder %s18, 1
      %p75 = por %p73, %p74
      %p76 = scmp.ne.s32.totalorder %s68, %s71
      %p77 = scmp.eq.s32.totalorder %s18, 0
      %p78 = por %p76, %p77
      %p79 = scmp.ne.s32.totalorder %s68, %s71
      %p80 = scmp.eq.s32.totalorder %s23, 1
      %p81 = por %p79, %p80
      %p82 = scmp.ne.s32.totalorder %s71, %s72
      %p83 = scmp.eq.s32.totalorder %s23, 0
      %p84 = por %p82, %p83
      %p85 = scmp.ne.s32.totalorder %s71, %s72
      %p86 = scmp.eq.s32.totalorder %s24, 1
      %p87 = por %p85, %p86
      %p89 = scmp.ne.s32.totalorder %s72, %s88
      %p90 = scmp.eq.s32.totalorder %s24, 0
      %p91 = por %p89, %p90
      %s93 = sadd.s32 %s92, 1
      %p96 = scmp.eq.s32.totalorder %s18, 1
      %p97 = scmp.ne.s32.totalorder %s92, %s94
      %p98 = scmp.eq.s32.totalorder %s18, 0
      %p99 = por %p97, %p98
      %p100 = scmp.ne.s32.totalorder %s92, %s94
      %p101 = scmp.eq.s32.totalorder %s23, 1
      %p102 = por %p100, %p101
      %p103 = scmp.ne.s32.totalorder %s94, %s95
      %p104 = scmp.eq.s32.totalorder %s23, 0
      %p105 = por %p103, %p104
      %p106 = scmp.ne.s32.totalorder %s94, %s95
      %p107 = scmp.eq.s32.totalorder %s24, 1
      %p108 = por %p106, %p107
      %p110 = scmp.ne.s32.totalorder %s95, %s109
      %p111 = scmp.eq.s32.totalorder %s24, 0
      %p112 = por %p110, %p111
      %s113 = ssub.s32 %s25, %s37
      %s114 = ssub.s32 %s26, %s33
      %s115 = sor.u32 %s113, %s114
      %p116 = scmp.eq.s32.totalorder %s115, 0
      %s118 = sadd.s32 %s117, 1
      %s119 = scalar_select %p116, %s117, %s118
      %p122 = pneg %p116
      %p123 = scmp.eq.s32.totalorder %s18, 1
      %p124 = por %p122, %p123
      %p125 = scmp.ne.s32.totalorder %s117, %s120
      %p126 = scmp.eq.s32.totalorder %s18, 0
      %p127 = por %p125, %p126
      %p128 = scmp.ne.s32.totalorder %s117, %s120
      %p129 = scmp.eq.s32.totalorder %s23, 1
      %p130 = por %p128, %p129
      %p131 = scmp.ne.s32.totalorder %s120, %s121
      %p132 = scmp.eq.s32.totalorder %s23, 0
      %p133 = por %p131, %p132
      %p134 = scmp.ne.s32.totalorder %s120, %s121
      %p135 = scmp.eq.s32.totalorder %s24, 1
      %p136 = por %p134, %p135
      %p138 = scmp.ne.s32.totalorder %s121, %s137
      %p139 = scmp.eq.s32.totalorder %s24, 0
      %p140 = por %p138, %p139
      %p141 = scmp.le.s32.totalorder 1, %s18
      %p142 = scmp.lt.s32.totalorder %s18, 3
      %p143 = pnand %p141, %p142
      %p144 = pneg %p143
      // Predicated region
      $region9: #{tpu_custom_call.1} parent=5 // pred_check
        _
      $region10: #{tpu_custom_call.1} parent=5 // pred_check_branch
        %146 = sbr.rel (%p143) target = $region12
      $region11: #{tpu_custom_call.1} parent=5 // pred_region
        %s147 = ssub.s32 %s18, 1
        // Predicated region
        $region13: #{tpu_custom_call.1} parent=11 // pred_check
          %p148 = pneg %p105
        $region14: #{tpu_custom_call.1} parent=11 // pred_check_branch
          %150 = sbr.rel (%p148) target = $region16
        $region15: #{tpu_custom_call.1} parent=11 // pred_region
          %s152 = ssub.s32 512, 512
          %153 = vsyncadd [#allocation6], %s152
          %s154 = sshll.u32 [#allocation7], 4
          %s155 = int_to_ptr.vmem [resolvable:$true] %s154
          %160 = dma.hbm_to_vmem [thread:$0]  %s2, 512, %s155, [#allocation6], 128, 128, 8
        $region16: #{tpu_custom_call.1} parent=11 // pred_fallthru
          _
      $region12: #{tpu_custom_call.1} parent=5 // pred_fallthru
        _
      %p161 = scmp.lt.s32.totalorder %s18, 2
      // Predicated region
      $region17: #{tpu_custom_call.1} parent=5 // pred_check
        %p162 = pneg %p161
      $region18: #{tpu_custom_call.1} parent=5 // pred_check_branch
        %164 = sbr.rel (%p162) target = $region20
      $region19: #{tpu_custom_call.1} parent=5 // pred_region
        // Predicated region
        $region21: #{tpu_custom_call.1} parent=19 // pred_check
          %p165 = pneg %p52
        $region22: #{tpu_custom_call.1} parent=19 // pred_check_branch
          %167 = sbr.rel (%p165) target = $region24
        $region23: #{tpu_custom_call.1} parent=19 // pred_region
          %s168 = sand.u32 %s42, 1
          %s169 = scalar_lea.sflag [#allocation3], %s168
          %s170 = sand.u32 %s42, 1
          %s171 = smul.addr %s170, 8
          %s172 = scalar_lea.vmem [#allocation2], %s171
          %s174 = ssub.s32 128, 128
          %175 = vsyncadd %s169, %s174
          %s176 = sadd.s32 %s26, %s25
          %s177 = smul.addr %s176, 128
          %s178 = scalar_lea.hbm %s0, %s177
          %s180 = sshll.u32 %s172, 4
          %s181 = int_to_ptr.vmem [resolvable:$true] %s180
          %183 = dma.hbm_to_vmem [thread:$0]  %s178, 128, %s181, %s169
        $region24: #{tpu_custom_call.1} parent=19 // pred_fallthru
          _
        // Predicated region
        $region25: #{tpu_custom_call.1} parent=19 // pred_check
          %p184 = pneg %p78
        $region26: #{tpu_custom_call.1} parent=19 // pred_check_branch
          %186 = sbr.rel (%p184) target = $region28
        $region27: #{tpu_custom_call.1} parent=19 // pred_region
          %s187 = sand.u32 %s18, 1
          %s188 = scalar_lea.sflag [#allocation6], %s187
          %s189 = sand.u32 %s68, 1
          %s190 = scalar_lea.vmem [#allocation5], %s189
          %s192 = ssub.s32 16, 16
          %193 = vsyncadd %s188, %s192
          %s194 = smul.addr %s25, 16
          %s195 = scalar_lea.hbm %s1, %s194
          %s197 = sshll.u32 %s190, 4
          %s198 = int_to_ptr.vmem [resolvable:$true] %s197
          %200 = dma.hbm_to_vmem [thread:$0]  %s195, 16, %s198, %s188
        $region28: #{tpu_custom_call.1} parent=19 // pred_fallthru
          _
      $region20: #{tpu_custom_call.1} parent=5 // pred_fallthru
        _
      %p201 = scmp.le.s32.totalorder 1, %s18
      %p202 = scmp.lt.s32.totalorder %s18, 3
      %p203 = pnand %p201, %p202
      %p204 = pneg %p203
      // Predicated region
      $region29: #{tpu_custom_call.1} parent=5 // pred_check
        _
      $region30: #{tpu_custom_call.1} parent=5 // pred_check_branch
        %206 = sbr.rel (%p203) target = $region32
      $region31: #{tpu_custom_call.1} parent=5 // pred_region
        %s207 = ssub.s32 %s18, 1
        %s208 = sand.u32 %s45, 1
        %s209 = scalar_lea.sflag [#allocation3], %s208
        %s210 = sand.u32 %s45, 1
        %s211 = smul.addr %s210, 8
        %s212 = scalar_lea.vmem [#allocation2], %s211
        // Predicated region
        $region33: #{tpu_custom_call.1} parent=31 // pred_check
          %p213 = pneg %p58
        $region34: #{tpu_custom_call.1} parent=31 // pred_check_branch
          %215 = sbr.rel (%p213) target = $region36
        $region35: #{tpu_custom_call.1} parent=31 // pred_region
          %216 = dma.done %s209, 128
        $region36: #{tpu_custom_call.1} parent=31 // pred_fallthru
          _
        %s217 = sand.u32 %s23, 1
        %s218 = scalar_lea.sflag [#allocation6], %s217
        %s219 = sand.u32 %s71, 1
        %s220 = scalar_lea.vmem [#allocation5], %s219
        // Predicated region
        $region37: #{tpu_custom_call.1} parent=31 // pred_check
          %p221 = pneg %p84
        $region38: #{tpu_custom_call.1} parent=31 // pred_check_branch
          %223 = sbr.rel (%p221) target = $region40
        $region39: #{tpu_custom_call.1} parent=31 // pred_region
          %224 = dma.done %s218, 16
        $region40: #{tpu_custom_call.1} parent=31 // pred_fallthru
          _
        // Predicated region
        $region41: #{tpu_custom_call.1} parent=31 // pred_check
          %p225 = pneg %p105
        $region42: #{tpu_custom_call.1} parent=31 // pred_check_branch
          %227 = sbr.rel (%p225) target = $region44
        $region43: #{tpu_custom_call.1} parent=31 // pred_region
          %228 = dma.done [#allocation6], 512
        $region44: #{tpu_custom_call.1} parent=31 // pred_fallthru
          _
        %s229 = sand.u32 %s45, 1
        %s230 = scalar_lea.sflag [#allocation3], %s229
        %s231 = sand.u32 %s45, 1
        %s232 = smul.addr %s231, 8
        %s233 = scalar_lea.vmem [#allocation2], %s232
        %p234 = pneg %p58
        %p235 = pneg %p55
        %s236 = sand.u32 %s23, 1
        %s237 = scalar_lea.sflag [#allocation6], %s236
        %s238 = sand.u32 %s71, 1
        %s239 = scalar_lea.vmem [#allocation5], %s238
        %p240 = pneg %p84
        %p241 = pneg %p81
        %p242 = pneg %p105
        %p243 = pneg %p102
        %p244 = pneg %p133
        %p245 = pneg %p130
        %s246 = sand.u32 %s120, 1
        %s247 = scalar_lea.sflag [#allocation4], %s246
        %s248 = sand.u32 %s120, 1
        %s249 = smul.addr %s248, 8
        %s250 = scalar_lea.vmem [#allocation8], %s249
        %v251 = vld [vmem:[%s212] sm:$0xff]
        %v252 = vld [vmem:[#allocation7] sm:$0xff]
        %v253 = vld [vmem:[#allocation7 + $0x8] sm:$0xff]
        %v254 = vld [vmem:[#allocation7 + $0x10] sm:$0xff]
        %v255 = vld [vmem:[#allocation7 + $0x18] sm:$0xff]
        %vm256 = vcmask 261120
        %v258 = vsel %vm256, %v251, 0
        %260 = vmatprep.subr.mxu0 0.0
        %261 = vmatpush1.msra.mxu0 0.0
        %262 = vmatprep.subr.mxu0 0.0
        %263 = vmatpush1.msra.mxu0 0.0
        %264 = vmatprep.subr.mxu0 0.0
        %265 = vmatpush1.msra.mxu0 0.0
        %266 = vmatprep.subr.mxu0 0.0
        %267 = vmatpush1.msra.mxu0 0.0
        %268 = vmatprep.subr.mxu0 0.0
        %269 = vmatpush1.msra.mxu0 0.0
        %270 = vmatprep.subr.mxu0 0.0
        %271 = vmatpush1.msra.mxu0 0.0
        %272 = vmatprep.subr.mxu0 0.0
        %273 = vmatpush1.msra.mxu0 0.0
        %274 = vmatprep.subr.mxu0 0.0
        %275 = vmatpush1.msra.mxu0 0.0
        %276 = vmatprep.subr.mxu0 0.0
        %277 = vmatpush1.msra.mxu0 0.0
        %278 = vmatprep.subr.mxu0 0.0
        %279 = vmatpush1.msra.mxu0 0.0
        %280 = vmatprep.subr.mxu0 0.0
        %281 = vmatpush1.msra.mxu0 0.0
        %282 = vmatprep.subr.mxu0 0.0
        %283 = vmatpush1.msra.mxu0 0.0
        %284 = vmatprep.subr.mxu0 0.0
        %285 = vmatpush1.msra.mxu0 %v255
        %286 = vmatprep.subr.mxu0 0.0
        %287 = vmatpush1.msra.mxu0 %v254
        %288 = vmatprep.subr.mxu0 0.0
        %289 = vmatpush1.msra.mxu0 %v253
        %290 = vmatprep.subr.mxu0 0.0
        %291 = vmatpush1.msra.mxu0 %v252
        %292 = vmatprep.subr.mxu0 0.0
        %293 = vmatpush2.msra.mxu0 0.0
        %294 = vmatprep.subr.mxu0 0.0
        %295 = vmatpush2.msra.mxu0 0.0
        %296 = vmatprep.subr.mxu0 0.0
        %297 = vmatpush2.msra.mxu0 0.0
        %298 = vmatprep.subr.mxu0 0.0
        %299 = vmatpush2.msra.mxu0 0.0
        %300 = vmatprep.subr.mxu0 0.0
        %301 = vmatpush2.msra.mxu0 0.0
        %302 = vmatprep.subr.mxu0 0.0
        %303 = vmatpush2.msra.mxu0 0.0
        %304 = vmatprep.subr.mxu0 0.0
        %305 = vmatpush2.msra.mxu0 0.0
        %306 = vmatprep.subr.mxu0 0.0
        %307 = vmatpush2.msra.mxu0 0.0
        %308 = vmatprep.subr.mxu0 0.0
        %309 = vmatpush2.msra.mxu0 0.0
        %310 = vmatprep.subr.mxu0 0.0
        %311 = vmatpush2.msra.mxu0 0.0
        %312 = vmatprep.subr.mxu0 0.0
        %313 = vmatpush2.msra.mxu0 0.0
        %314 = vmatprep.subr.mxu0 0.0
        %315 = vmatpush2.msra.mxu0 0.0
        %316 = vmatprep.subr.mxu0 0.0
        %317 = vmatpush2.msra.mxu0 0.0
        %318 = vmatprep.subr.mxu0 0.0
        %319 = vmatpush2.msra.mxu0 0.0
        %320 = vmatprep.subr.mxu0 0.0
        %321 = vmatpush2.msra.mxu0 0.0
        %322 = vmatprep.subr.mxu0 0.0
        %323 = vmatpush2.msra.mxu0 0.0
        %324 = vmatprep.mubr.f32.mxu0 0.0
        %325 = vmatmul.mubr.f32.gmra.mxu0 %v258
        %v326 = vpop.f32.mrf.mxu0
        %v327 = vadd.f32 0.0, %v326
        %v328 = vpop.f32.mrf.mxu0
        %329 = vdwg.mxu0
        %v330 = vld [vmem:[%s220] sm:$0x1]
        %v332 = vlaneseq
        %v333 = vshrl.u32 %v332, 7
        %v334 = vsub.s32 0, %v333
        %v335 = vrot.slane %v330, %v334
        %v337 = vadd.f32 %v327, %v335
        %vm338 = vcmask 523264
        %339 = vst.msk [vmem:[%s250] sm:$0xff] %vm338, %v337
        %s340 = sand.u32 %s120, 1
        %s341 = scalar_lea.sflag [#allocation4], %s340
        %s342 = sand.u32 %s120, 1
        %s343 = smul.addr %s342, 8
        %s344 = scalar_lea.vmem [#allocation8], %s343
        // Predicated region
        $region45: #{tpu_custom_call.1} parent=31 // pred_check
          %p345 = pneg %p130
        $region46: #{tpu_custom_call.1} parent=31 // pred_check_branch
          %347 = sbr.rel (%p345) target = $region48
        $region47: #{tpu_custom_call.1} parent=31 // pred_region
          %s349 = ssub.s32 128, 128
          %350 = vsyncadd %s341, %s349
          %s351 = sadd.s32 %s28, %s27
          %s352 = smul.addr %s351, 128
          %s353 = scalar_lea.hbm %s3, %s352
          %s355 = sshll.u32 %s344, 4
          %s356 = int_to_ptr.vmem [resolvable:$true] %s355
          %358 = dma.vmem_to_hbm [thread:$0]  %s356, 128, %s353, %s341
        $region48: #{tpu_custom_call.1} parent=31 // pred_fallthru
          _
      $region32: #{tpu_custom_call.1} parent=5 // pred_fallthru
        _
      %p359 = scmp.le.s32.totalorder 2, %s18
      // Predicated region
      $region49: #{tpu_custom_call.1} parent=5 // pred_check
        %p360 = pneg %p359
      $region50: #{tpu_custom_call.1} parent=5 // pred_check_branch
        %362 = sbr.rel (%p360) target = $region52
      $region51: #{tpu_custom_call.1} parent=5 // pred_region
        %s363 = ssub.s32 %s18, 2
        // Predicated region
        $region53: #{tpu_custom_call.1} parent=51 // pred_check
          %p364 = pneg %p136
        $region54: #{tpu_custom_call.1} parent=51 // pred_check_branch
          %366 = sbr.rel (%p364) target = $region56
        $region55: #{tpu_custom_call.1} parent=51 // pred_region
          %s367 = sand.u32 %s121, 1
          %s368 = scalar_lea.sflag [#allocation4], %s367
          %s369 = sand.u32 %s121, 1
          %s370 = smul.addr %s369, 8
          %s371 = scalar_lea.vmem [#allocation8], %s370
          %372 = dma.done %s368, 128
        $region56: #{tpu_custom_call.1} parent=51 // pred_fallthru
          _
      $region52: #{tpu_custom_call.1} parent=5 // pred_fallthru
        _
    $region6: #{tpu_custom_call.1} parent=1 // loop_footer
      %s22 = sadd.s32 1, %s18
    $region7: #{tpu_custom_call.1} parent=1 // loop_footer_branch
      %17 = sbr.rel target = $region3
    $region8: #{tpu_custom_call.1} parent=1 // loop_exit
      _
    %373 = vsyncpa [#allocation3], 1
    %s374 = scalar_lea.sflag [#allocation3], 1
    %375 = vsyncpa %s374, 1
    %376 = vsyncpa [#allocation6], 1
    %s377 = scalar_lea.sflag [#allocation6], 1
    %378 = vsyncpa %s377, 1
    %379 = vsyncpa [#allocation4], 1
    %s380 = scalar_lea.sflag [#allocation4], 1
    %381 = vsyncpa %s380, 1

</llo_original>
